<compile_context>
chip_gen: v5e
topology: v5e:2x2
jax: 0.10.0
libtpu: 0.0.40
codegen_flags: <defaults>
</compile_context>

<pallas_src>
import math

import jax
import jax.numpy as jnp
from jax.experimental import pallas as pl
from jax.experimental.pallas import tpu as pltpu


_NSPLIT = 2        # leading grid axis: shards the reduction across TCs on v7x
_LANE = 128
_MAX_L = 1024      # cap on the lane-packed row width


def _moments_kernel(y_ref, zs_ref, out_ref):
    """Accumulate raw per-lane moments of y and zs into a (32, L) strip.

    out rows  0: 8  -> sum(y)      rows  8:16 -> sum(y*y)
    out rows 16:24  -> sum(zs)     rows 24:32 -> sum(zs*zs)

    The strips are (8, L) sublane-aligned partial sums (pure VALU adds of whole
    vregs; no cross-sublane XLU work, no masked sub-sublane stores).  The
    cross-sublane / lane reduction and all affine log-prob algebra happen once
    in the O(L) wrapper finalize.
    """
    i = pl.program_id(1)

    @pl.when(i == 0)
    def _init():
        out_ref[...] = jnp.zeros_like(out_ref)

    tr, L = y_ref.shape
    nsub = tr // 8
    y = y_ref[...].astype(jnp.float32).reshape(nsub, 8, L)
    zs = zs_ref[...].astype(jnp.float32).reshape(nsub, 8, L)

    out_ref[0:8, :] += jnp.sum(y, axis=0)
    out_ref[8:16, :] += jnp.sum(y * y, axis=0)
    out_ref[16:24, :] += jnp.sum(zs, axis=0)
    out_ref[24:32, :] += jnp.sum(zs * zs, axis=0)


def _choose_lane_width(d):
    """Lane-dense packed row width: lcm(D, 128) when reasonable, else D."""
    lcm = d * (_LANE // math.gcd(d, _LANE))
    return lcm if lcm <= _MAX_L else d


def _tile_plan(lane_width, itemsize):
    """(tile_rows, vmem_limit_bytes, row_mult) sized from this chip's VMEM."""
    try:
        info = pltpu.get_tpu_info()
        vmem_cap = int(getattr(info, "vmem_capacity_bytes", 64 * 1024 * 1024))
    except Exception:
        vmem_cap = 64 * 1024 * 1024           # conservative (v7x-sized) default
    # v5e/v6e (128 MiB): 96 MiB scoped limit; v7x (64 MiB): 48 MiB.
    vmem_limit = min((vmem_cap * 3) // 4, 96 * 1024 * 1024)
    # Sublane multiple per dtype: 8 for f32, 16 for bf16, 32 for int8/fp8.
    row_mult = max(8, 32 // max(itemsize, 1))
    # 2 inputs x 2 pipeline buffers resident + f32 temps -> ~1/12 of limit each.
    rows = (vmem_limit // 12) // (lane_width * max(itemsize, 1))
    rows = max(row_mult, (rows // row_mult) * row_mult)
    return rows, vmem_limit, row_mult


def mix_kl_loss_pallas(y, z_sample, s, t, mu, log_sigma, alpha=0.99,
                       *, max_tile_rows=None):
    """Returns (est, grad_est) scalars, matching MixKLLoss.forward semantics."""
    B, D = y.shape
    f32 = jnp.float32
    s = s.reshape(-1).astype(f32)
    t = t.reshape(-1).astype(f32)
    mu = mu.reshape(-1).astype(f32)
    log_sigma = log_sigma.reshape(-1).astype(f32)

    # ---- lane-dense packing of the streamed data (native dtype, zero-pad) ----
    L = _choose_lane_width(D)
    itemsize = jnp.dtype(y.dtype).itemsize
    tile_rows, vmem_limit, row_mult = _tile_plan(L, itemsize)
    if max_tile_rows is not None:
        tile_rows = max(row_mult,
                        (min(tile_rows, int(max_tile_rows)) // row_mult) * row_mult)

    n_elems = B * D
    R = pl.cdiv(n_elems, L)                         # packed data rows
    per_split = pl.cdiv(R, _NSPLIT)
    per_split_r = max(row_mult,
                      ((per_split + row_mult - 1) // row_mult) * row_mult)
    tile_rows = min(tile_rows, per_split_r)
    tiles_per_split = pl.cdiv(R, _NSPLIT * tile_rows)
    R_pad = _NSPLIT * tiles_per_split * tile_rows

    def pack(x):
        flat = x.reshape(-1)
        pad = R_pad * L - n_elems
        if pad:                                     # zero rows contribute 0 moments
            flat = jnp.concatenate([flat, jnp.zeros((pad,), dtype=x.dtype)])
        return flat.reshape(R_pad, L)

    y_p = pack(y)
    zs_p = pack(z_sample)

    data_spec = pl.BlockSpec((tile_rows, L),
                             lambda c, i: (c * tiles_per_split + i, 0))

    moments = pl.pallas_call(
        _moments_kernel,
        out_shape=jax.ShapeDtypeStruct((_NSPLIT, 32, L), jnp.float32),
        grid_spec=pltpu.PrefetchScalarGridSpec(
            num_scalar_prefetch=0,
            grid=(_NSPLIT, tiles_per_split),
            in_specs=[data_spec, data_spec],
            out_specs=pl.BlockSpec((None, 32, L), lambda c, i: (c, 0, 0)),
        ),
        compiler_params=pltpu.CompilerParams(
            dimension_semantics=("parallel", "arbitrary"),   # TC split, reduction
            vmem_limit_bytes=vmem_limit),
    )(y_p, zs_p)

    # ---- O(L) finalize in the wrapper (cross-core + sublane + lane reduce) ----
    m = jnp.sum(moments.reshape(_NSPLIT, 4, 8, L), axis=(0, 2))   # (4, L)
    m1y, m2y, m1z, m2z = m[0], m[1], m[2], m[3]

    reps = L // D                       # lane l of any packed row maps to column l % D
    exp_s = jnp.exp(s)
    exp_nls = jnp.exp(-log_sigma)
    a_b = jnp.exp(-(s + log_sigma))     # fused flow-inverse + whitening slope
    b_b = -(t + mu * exp_s) * a_b       # fused flow-inverse + whitening offset

    def affine_sq_sum(a_d, b_d, m1, m2):
        # sum over all B*D elements of (a*x + b)^2 from raw moments of x.
        a = jnp.tile(a_d, reps)
        b = jnp.tile(b_d, reps)
        return jnp.sum(a * a * m2 + 2.0 * a * b * m1) + B * jnp.sum(b_d * b_d)

    s_zz = affine_sq_sum(exp_s, t, m1y, m2y)                 # sum (y*e^s + t)^2
    s_uy = affine_sq_sum(exp_nls, -mu * exp_nls, m1y, m2y)   # sum ((y-mu)/sigma)^2
    s_zs = jnp.sum(m2z)                                      # sum zs^2
    s_ub = affine_sq_sum(a_b, b_b, m1z, m2z)                 # sum ((f^-1(zs)-mu)/sigma)^2

    c0 = 0.5 * D * math.log(2.0 * math.pi)
    inv_b = 1.0 / B
    sum_s = jnp.sum(s)
    sum_logsig = jnp.sum(log_sigma)

    mean_prop_z = -0.5 * inv_b * s_zz - c0          # mean proposal.log_prob(flow(y))
    mean_targ_y = -0.5 * inv_b * s_uy - sum_logsig - c0   # mean target.log_prob(y)
    mean_prop_zs = -0.5 * inv_b * s_zs - c0         # mean proposal.log_prob(zs)
    mean_targ_xb = -0.5 * inv_b * s_ub - sum_logsig - c0  # mean target.log_prob(f^-1(zs))

    grad_f = -mean_prop_z - sum_s                   # -prop(z) - log_jac
    est_f = mean_targ_y + grad_f                    # targ(y) - prop(z) - log_jac
    grad_b = sum_s - mean_targ_xb                   # -log_jac_inv - targ(x_b)
    est_b = mean_prop_zs + grad_b                   # prop(zs) - log_jac_inv - targ(x_b)
    grad_b = jnp.where(jnp.isnan(grad_b), jnp.zeros_like(grad_b), grad_b)

    a = jnp.float32(alpha)
    est = a * est_f + (1.0 - a) * est_b
    grad = a * grad_f + (1.0 - a) * grad_b
    return est, grad


def mix_kl_loss_ref(y, z_sample, s, t, mu, log_sigma, alpha=0.99):
    """Pure-JAX reference (mirrors the PyTorch mix_kl semantics)."""
    D = y.shape[-1]
    s = s.reshape(-1); t = t.reshape(-1)
    mu = mu.reshape(-1); log_sigma = log_sigma.reshape(-1)
    c = 0.5 * D * math.log(2.0 * math.pi)

    def prop_lp(v):
        return -0.5 * jnp.sum(v * v, axis=-1) - c

    def targ_lp(v):
        u = (v - mu) * jnp.exp(-log_sigma)
        return -0.5 * jnp.sum(u * u, axis=-1) - jnp.sum(log_sigma) - c

    log_jac = jnp.sum(s)
    z = y * jnp.exp(s) + t
    est_f = jnp.mean(targ_lp(y) - (prop_lp(z) + log_jac))
    grad_f = jnp.mean(-prop_lp(z) - log_jac)

    x_b = (z_sample - t) * jnp.exp(-s)
    log_jac_inv = -log_jac
    est_b = jnp.mean(prop_lp(z_sample) - log_jac_inv - targ_lp(x_b))
    grad_b = jnp.mean(-log_jac_inv - targ_lp(x_b))
    grad_b = jnp.where(jnp.isnan(grad_b), 0.0, grad_b)
    return (alpha * est_f + (1.0 - alpha) * est_b,
            alpha * grad_f + (1.0 - alpha) * grad_b)


if __name__ == "__main__":
    alpha = 0.99
    key = jax.random.PRNGKey(0)

    def make_case(key, B, D):
        k_y, k_z, k_s, k_t, k_mu, k_ls = jax.random.split(key, 6)
        y = jax.random.normal(k_y, (B, D), dtype=jnp.float32)
        # proposal.sample(y.shape[:-1]) -- standard normal draw (wrapper-side PRNG)
        z_sample = jax.random.normal(k_z, (B, D), dtype=jnp.float32)
        s = 0.1 * jax.random.normal(k_s, (1, D), dtype=jnp.float32)
        t = 0.1 * jax.random.normal(k_t, (1, D), dtype=jnp.float32)
        mu = 0.5 * jax.random.normal(k_mu, (1, D), dtype=jnp.float32)
        log_sigma = 0.1 * jax.random.normal(k_ls, (1, D), dtype=jnp.float32)
        return y, z_sample, s, t, mu, log_sigma

    k1, k2, k3 = jax.random.split(key, 3)

    # Case 1: lane-dense packing (D=32 -> L=128), forced small tiles to exercise
    # the multi-tile accumulation path on both grid splits.
    args1 = make_case(k1, B=256, D=32)
    est1, grad1 = mix_kl_loss_pallas(*args1, alpha=alpha, max_tile_rows=8)
    jax.block_until_ready((est1, grad1))
    est1_r, grad1_r = mix_kl_loss_ref(*args1, alpha=alpha)
    assert jnp.allclose(est1, est1_r, rtol=1e-3, atol=1e-3), (est1, est1_r)
    assert jnp.allclose(grad1, grad1_r, rtol=1e-3, atol=1e-3), (grad1, grad1_r)

    # Case 2: non-power-of-two D (48 -> L=lcm(48,128)=384), heavy zero-padding.
    args2 = make_case(k2, B=8, D=48)
    est2, grad2 = mix_kl_loss_pallas(*args2, alpha=alpha)
    jax.block_until_ready((est2, grad2))
    est2_r, grad2_r = mix_kl_loss_ref(*args2, alpha=alpha)
    assert jnp.allclose(est2, est2_r, rtol=1e-3, atol=1e-3), (est2, est2_r)
    assert jnp.allclose(grad2, grad2_r, rtol=1e-3, atol=1e-3), (grad2, grad2_r)

    # Case 3: default (chip-derived) tiling, no padding needed.
    args3 = make_case(k3, B=512, D=64)
    est3, grad3 = mix_kl_loss_pallas(*args3, alpha=alpha)
    jax.block_until_ready((est3, grad3))
    est3_r, grad3_r = mix_kl_loss_ref(*args3, alpha=alpha)
    assert jnp.allclose(est3, est3_r, rtol=1e-3, atol=1e-3), (est3, est3_r)
    assert jnp.allclose(grad3, grad3_r, rtol=1e-3, atol=1e-3), (grad3, grad3_r)

    print("KERNEL_OK")
</pallas_src>

<mosaic_0001>
module attributes {stable_mosaic.version = 11 : i64} {
  func.func @_moments_kernel(%arg0: i32, %arg1: i32, %arg2: memref<8x128xf32, #tpu.memory_space<vmem>>, %arg3: memref<8x128xf32, #tpu.memory_space<vmem>>, %arg4: memref<1x32x128xf32, #tpu.memory_space<vmem>>) attributes {dimension_semantics = [#tpu.dimension_semantics<parallel>, #tpu.dimension_semantics<arbitrary>], iteration_bounds = array<i64: 2, 4>, scalar_prefetch = 0 : i64, scratch_operands = 0 : i64, tpu.core_type = #tpu.core_type<tc>, window_params = [{transform_indices = @transform_0, window_bounds = array<i64: 8, 128>}, {transform_indices = @transform_1, window_bounds = array<i64: 8, 128>}, {transform_indices = @transform_2, window_bounds = array<i64: 1, 32, 128>}]} {
    %c0_i32 = arith.constant 0 : i32
    %0 = arith.cmpi eq, %arg1, %c0_i32 : i32
    %1 = arith.extui %0 : i1 to i32
    %c0_i32_0 = arith.constant 0 : i32
    %2 = arith.cmpi ne, %1, %c0_i32_0 : i32
    scf.if %2 {
      %cst_28 = arith.constant 0.000000e+00 : f32
      %37 = vector.broadcast %cst_28 : f32 to vector<32x128xf32>
      %c0_29 = arith.constant 0 : index
      %c0_30 = arith.constant 0 : index
      %c0_31 = arith.constant 0 : index
      %38 = vector.load %arg4[%c0_29, %c0_30, %c0_31] : memref<1x32x128xf32, #tpu.memory_space<vmem>>, vector<1x32x128xf32>
      %39 = vector.shape_cast %38 : vector<1x32x128xf32> to vector<32x128xf32>
      %40 = vector.shape_cast %37 : vector<32x128xf32> to vector<1x32x128xf32>
      tpu.vector_store %arg4[%c0_29, %c0_30, %c0_31], %40 {strides = array<i32>} : memref<1x32x128xf32, #tpu.memory_space<vmem>>, vector<1x32x128xf32>,
    } else {
    }
    %c0 = arith.constant 0 : index
    %c0_1 = arith.constant 0 : index
    %3 = vector.load %arg2[%c0, %c0_1] : memref<8x128xf32, #tpu.memory_space<vmem>>, vector<8x128xf32>
    %4 = vector.shape_cast %3 : vector<8x128xf32> to vector<1x8x128xf32>
    %c0_2 = arith.constant 0 : index
    %c0_3 = arith.constant 0 : index
    %5 = vector.load %arg3[%c0_2, %c0_3] : memref<8x128xf32, #tpu.memory_space<vmem>>, vector<8x128xf32>
    %6 = vector.shape_cast %5 : vector<8x128xf32> to vector<1x8x128xf32>
    %c0_4 = arith.constant 0 : index
    %c0_5 = arith.constant 0 : index
    %c0_6 = arith.constant 0 : index
    %7 = vector.load %arg4[%c0_4, %c0_5, %c0_6] : memref<1x32x128xf32, #tpu.memory_space<vmem>>, vector<1x8x128xf32>
    %8 = vector.shape_cast %7 : vector<1x8x128xf32> to vector<8x128xf32>
    %cst = arith.constant dense<0.000000e+00> : vector<8x128xf32>
    %9 = vector.multi_reduction <add>, %4, %cst [0] : vector<1x8x128xf32> to vector<8x128xf32>
    %10 = arith.addf %8, %9 : vector<8x128xf32>
    %c0_7 = arith.constant 0 : index
    %c0_8 = arith.constant 0 : index
    %c0_9 = arith.constant 0 : index
    %11 = vector.load %arg4[%c0_7, %c0_8, %c0_9] : memref<1x32x128xf32, #tpu.memory_space<vmem>>, vector<1x8x128xf32>
    %12 = vector.shape_cast %11 : vector<1x8x128xf32> to vector<8x128xf32>
    %13 = vector.shape_cast %10 : vector<8x128xf32> to vector<1x8x128xf32>
    tpu.vector_store %arg4[%c0_7, %c0_8, %c0_9], %13 {strides = array<i32>} : memref<1x32x128xf32, #tpu.memory_space<vmem>>, vector<1x8x128xf32>,
    %c0_10 = arith.constant 0 : index
    %c8 = arith.constant 8 : index
    %c0_11 = arith.constant 0 : index
    %14 = vector.load %arg4[%c0_10, %c8, %c0_11] : memref<1x32x128xf32, #tpu.memory_space<vmem>>, vector<1x8x128xf32>
    %15 = vector.shape_cast %14 : vector<1x8x128xf32> to vector<8x128xf32>
    %16 = arith.mulf %4, %4 : vector<1x8x128xf32>
    %cst_12 = arith.constant dense<0.000000e+00> : vector<8x128xf32>
    %17 = vector.multi_reduction <add>, %16, %cst_12 [0] : vector<1x8x128xf32> to vector<8x128xf32>
    %18 = arith.addf %15, %17 : vector<8x128xf32>
    %c0_13 = arith.constant 0 : index
    %c8_14 = arith.constant 8 : index
    %c0_15 = arith.constant 0 : index
    %19 = vector.load %arg4[%c0_13, %c8_14, %c0_15] : memref<1x32x128xf32, #tpu.memory_space<vmem>>, vector<1x8x128xf32>
    %20 = vector.shape_cast %19 : vector<1x8x128xf32> to vector<8x128xf32>
    %21 = vector.shape_cast %18 : vector<8x128xf32> to vector<1x8x128xf32>
    tpu.vector_store %arg4[%c0_13, %c8_14, %c0_15], %21 {strides = array<i32>} : memref<1x32x128xf32, #tpu.memory_space<vmem>>, vector<1x8x128xf32>,
    %c0_16 = arith.constant 0 : index
    %c16 = arith.constant 16 : index
    %c0_17 = arith.constant 0 : index
    %22 = vector.load %arg4[%c0_16, %c16, %c0_17] : memref<1x32x128xf32, #tpu.memory_space<vmem>>, vector<1x8x128xf32>
    %23 = vector.shape_cast %22 : vector<1x8x128xf32> to vector<8x128xf32>
    %cst_18 = arith.constant dense<0.000000e+00> : vector<8x128xf32>
    %24 = vector.multi_reduction <add>, %6, %cst_18 [0] : vector<1x8x128xf32> to vector<8x128xf32>
    %25 = arith.addf %23, %24 : vector<8x128xf32>
    %c0_19 = arith.constant 0 : index
    %c16_20 = arith.constant 16 : index
    %c0_21 = arith.constant 0 : index
    %26 = vector.load %arg4[%c0_19, %c16_20, %c0_21] : memref<1x32x128xf32, #tpu.memory_space<vmem>>, vector<1x8x128xf32>
    %27 = vector.shape_cast %26 : vector<1x8x128xf32> to vector<8x128xf32>
    %28 = vector.shape_cast %25 : vector<8x128xf32> to vector<1x8x128xf32>
    tpu.vector_store %arg4[%c0_19, %c16_20, %c0_21], %28 {strides = array<i32>} : memref<1x32x128xf32, #tpu.memory_space<vmem>>, vector<1x8x128xf32>,
    %c0_22 = arith.constant 0 : index
    %c24 = arith.constant 24 : index
    %c0_23 = arith.constant 0 : index
    %29 = vector.load %arg4[%c0_22, %c24, %c0_23] : memref<1x32x128xf32, #tpu.memory_space<vmem>>, vector<1x8x128xf32>
    %30 = vector.shape_cast %29 : vector<1x8x128xf32> to vector<8x128xf32>
    %31 = arith.mulf %6, %6 : vector<1x8x128xf32>
    %cst_24 = arith.constant dense<0.000000e+00> : vector<8x128xf32>
    %32 = vector.multi_reduction <add>, %31, %cst_24 [0] : vector<1x8x128xf32> to vector<8x128xf32>
    %33 = arith.addf %30, %32 : vector<8x128xf32>
    %c0_25 = arith.constant 0 : index
    %c24_26 = arith.constant 24 : index
    %c0_27 = arith.constant 0 : index
    %34 = vector.load %arg4[%c0_25, %c24_26, %c0_27] : memref<1x32x128xf32, #tpu.memory_space<vmem>>, vector<1x8x128xf32>
    %35 = vector.shape_cast %34 : vector<1x8x128xf32> to vector<8x128xf32>
    %36 = vector.shape_cast %33 : vector<8x128xf32> to vector<1x8x128xf32>
    tpu.vector_store %arg4[%c0_25, %c24_26, %c0_27], %36 {strides = array<i32>} : memref<1x32x128xf32, #tpu.memory_space<vmem>>, vector<1x8x128xf32>,
    return
  }
  func.func @transform_0(%arg0: i32, %arg1: i32) -> (i32, i32) {
    %c4_i32 = arith.constant 4 : i32
    %0 = arith.muli %arg0, %c4_i32 : i32
    %1 = arith.addi %0, %arg1 : i32
    %c0_i32 = arith.constant 0 : i32
    %c0_i32_0 = arith.constant 0 : i32
    return %1, %c0_i32 : i32, i32
  }
  func.func @transform_1(%arg0: i32, %arg1: i32) -> (i32, i32) {
    %c4_i32 = arith.constant 4 : i32
    %0 = arith.muli %arg0, %c4_i32 : i32
    %1 = arith.addi %0, %arg1 : i32
    %c0_i32 = arith.constant 0 : i32
    %c0_i32_0 = arith.constant 0 : i32
    return %1, %c0_i32 : i32, i32
  }
  func.func @transform_2(%arg0: i32, %arg1: i32) -> (i32, i32, i32) {
    %c0_i32 = arith.constant 0 : i32
    %c0_i32_0 = arith.constant 0 : i32
    %c0_i32_1 = arith.constant 0 : i32
    return %arg0, %c0_i32, %c0_i32_0 : i32, i32, i32
  }
}

</mosaic_0001>

<llo_original>
// kernel: tpu_custom_call.1
$region0: #{tpu_custom_call.1}
  #allocation0 [shape = 'u32[]', space=smem, size = 0x4, offset = 0x4, fixed_abs, tag = 'smem constant byte address 0x4 - core index']
  #allocation1 [shape = 'u32[72,128]{1,0:T(1,128)}', space=vmem, size = 0x9000, scoped, tag = 'internal scratch']
  %s0 = inlined_call_operand.hbm [shape: f32[64,128], index: 0, kind: input, shape index: {}]
  %s1 = inlined_call_operand.hbm [shape: f32[64,128], index: 1, kind: input, shape index: {}]
  %s2 = inlined_call_operand.hbm [shape: f32[2,32,128], index: 2, kind: output, shape index: {}]
  %s3 = sld [smem:[#allocation0]]
  $region53: #{tpu_custom_call.1} parent=0
    _
  %s5 = ssub.s32 1, %s3
  %s6 = scalar_select 0, %s5, %s3
  $region1: #{tpu_custom_call.1} parent=0
    #allocation2 [shape = 'u8[8192]{0}', space=vmem, size = 0x2000, scoped, tag = 'input window, operand 0']
    #allocation3 [shape = 's32[2]{0}', space=sflag, size = 0x8, scoped, tag = 'scoped memory for tpu_custom_call.1']
    #allocation4 [shape = 's32[2]{0}', space=sflag, size = 0x8, scoped, tag = 'scoped memory for tpu_custom_call.1']
    #allocation5 [shape = 'u8[8192]{0}', space=vmem, size = 0x2000, scoped, tag = 'input window, operand 1']
    #allocation6 [shape = 's32[2]{0}', space=sflag, size = 0x8, scoped, tag = 'scoped memory for tpu_custom_call.1']
    #allocation7 [shape = 'u8[32768]{0}', space=vmem, size = 0x8000, scoped, tag = 'output window, operand 0']
    %7 = vsyncpa [#allocation3], 0
    %s8 = scalar_lea.sflag [#allocation3], 1
    %9 = vsyncpa %s8, 0
    %10 = vsyncpa [#allocation6], 0
    %s11 = scalar_lea.sflag [#allocation6], 1
    %12 = vsyncpa %s11, 0
    %13 = vsyncpa [#allocation4], 0
    %s14 = scalar_lea.sflag [#allocation4], 1
    %15 = vsyncpa %s14, 0
    loop: start=0, step=1, limit=10
    $region2: #{tpu_custom_call.1} parent=1 // loop_pre_header
      _
    $region3: #{tpu_custom_call.1} parent=1 // loop_header
      %s17 = sphi 0, %s21
      %p18 = scmp.ge.s32.totalorder %s17, 10
      %s24 = sphi 0, %s36
      %s25 = sphi 0, %s32
      %s26 = sphi 0, %s24
      %s27 = sphi 0, %s25
      %s28 = sphi 0, %s26
      %s29 = sphi 0, %s27
      %s43 = sphi 0, %s45
      %s46 = sphi 0, %s43
      %s47 = sphi 0, %s46
      %s63 = sphi 0, %s47
      %s73 = sphi 0, %s75
      %s76 = sphi 0, %s73
      %s77 = sphi 0, %s76
      %s93 = sphi 0, %s77
      %s99 = sphi 0, %s101
      %s102 = sphi 0, %s99
      %s103 = sphi 0, %s102
      %s119 = sphi 0, %s103
    $region4: #{tpu_custom_call.1} parent=1 // loop_header_branch
      %20 = sbr.rel (%p18) target = $region8
    $region5: #{tpu_custom_call.1} parent=1 // loop_body
      %s22 = ssub.s32 %s17, 1
      %s23 = ssub.s32 %s17, 2
      %s30 = sadd.s32 1, %s25
      %p31 = scmp.ge.s32.totalorder %s30, 4
      %s32 = scalar_select %p31, 0, %s30
      %s33 = sadd.s32 1, %s24
      %s34 = scalar_select %p31, %s33, %s24
      %p35 = scmp.ge.s32.totalorder %s34, 2
      %s36 = scalar_select %p35, 0, %s34
      %s37 = smul.u32 %s24, 4
      %s38 = sadd.s32 %s37, %s25
      %s39 = smul.u32 %s36, 4
      %s40 = sadd.s32 %s39, %s32
      %s41 = ssub.s32 %s38, %s40
      %p42 = scmp.eq.s32.totalorder %s41, 0
      %s44 = sadd.s32 %s43, 1
      %s45 = scalar_select %p42, %s43, %s44
      %p48 = pneg %p42
      %p49 = scmp.eq.s32.totalorder %s17, 7
      %p50 = por %p48, %p49
      %p51 = scmp.ne.s32.totalorder %s43, %s46
      %p52 = scmp.eq.s32.totalorder %s17, 0
      %p53 = por %p51, %p52
      %p54 = scmp.ne.s32.totalorder %s43, %s46
      %p55 = scmp.eq.s32.totalorder %s22, 7
      %p56 = por %p54, %p55
      %p57 = scmp.ne.s32.totalorder %s46, %s47
      %p58 = scmp.eq.s32.totalorder %s22, 0
      %p59 = por %p57, %p58
      %p60 = scmp.ne.s32.totalorder %s46, %s47
      %p61 = scmp.eq.s32.totalorder %s23, 7
      %p62 = por %p60, %p61
      %p64 = scmp.ne.s32.totalorder %s47, %s63
      %p65 = scmp.eq.s32.totalorder %s23, 0
      %p66 = por %p64, %p65
      %s67 = smul.u32 %s24, 4
      %s68 = sadd.s32 %s67, %s25
      %s69 = smul.u32 %s36, 4
      %s70 = sadd.s32 %s69, %s32
      %s71 = ssub.s32 %s68, %s70
      %p72 = scmp.eq.s32.totalorder %s71, 0
      %s74 = sadd.s32 %s73, 1
      %s75 = scalar_select %p72, %s73, %s74
      %p78 = pneg %p72
      %p79 = scmp.eq.s32.totalorder %s17, 7
      %p80 = por %p78, %p79
      %p81 = scmp.ne.s32.totalorder %s73, %s76
      %p82 = scmp.eq.s32.totalorder %s17, 0
      %p83 = por %p81, %p82
      %p84 = scmp.ne.s32.totalorder %s73, %s76
      %p85 = scmp.eq.s32.totalorder %s22, 7
      %p86 = por %p84, %p85
      %p87 = scmp.ne.s32.totalorder %s76, %s77
      %p88 = scmp.eq.s32.totalorder %s22, 0
      %p89 = por %p87, %p88
      %p90 = scmp.ne.s32.totalorder %s76, %s77
      %p91 = scmp.eq.s32.totalorder %s23, 7
      %p92 = por %p90, %p91
      %p94 = scmp.ne.s32.totalorder %s77, %s93
      %p95 = scmp.eq.s32.totalorder %s23, 0
      %p96 = por %p94, %p95
      %s97 = ssub.s32 %s24, %s36
      %p98 = scmp.eq.s32.totalorder %s97, 0
      %s100 = sadd.s32 %s99, 1
      %s101 = scalar_select %p98, %s99, %s100
      %p104 = pneg %p98
      %p105 = scmp.eq.s32.totalorder %s17, 7
      %p106 = por %p104, %p105
      %p107 = scmp.ne.s32.totalorder %s99, %s102
      %p108 = scmp.eq.s32.totalorder %s17, 0
      %p109 = por %p107, %p108
      %p110 = scmp.ne.s32.totalorder %s99, %s102
      %p111 = scmp.eq.s32.totalorder %s22, 7
      %p112 = por %p110, %p111
      %p113 = scmp.ne.s32.totalorder %s102, %s103
      %p114 = scmp.eq.s32.totalorder %s22, 0
      %p115 = por %p113, %p114
      %p116 = scmp.ne.s32.totalorder %s102, %s103
      %p117 = scmp.eq.s32.totalorder %s23, 7
      %p118 = por %p116, %p117
      %p120 = scmp.ne.s32.totalorder %s103, %s119
      %p121 = scmp.eq.s32.totalorder %s23, 0
      %p122 = por %p120, %p121
      %p123 = scmp.le.s32.totalorder 1, %s17
      %p124 = scmp.lt.s32.totalorder %s17, 9
      %p125 = pnand %p123, %p124
      %p126 = pneg %p125
      // Predicated region
      $region9: #{tpu_custom_call.1} parent=5 // pred_check
        _
      $region10: #{tpu_custom_call.1} parent=5 // pred_check_branch
        %128 = sbr.rel (%p125) target = $region12
      $region11: #{tpu_custom_call.1} parent=5 // pred_region
        %s129 = ssub.s32 %s17, 1
      $region12: #{tpu_custom_call.1} parent=5 // pred_fallthru
        _
      %p130 = scmp.lt.s32.totalorder %s17, 8
      // Predicated region
      $region13: #{tpu_custom_call.1} parent=5 // pred_check
        %p131 = pneg %p130
      $region14: #{tpu_custom_call.1} parent=5 // pred_check_branch
        %133 = sbr.rel (%p131) target = $region16
      $region15: #{tpu_custom_call.1} parent=5 // pred_region
        // Predicated region
        $region17: #{tpu_custom_call.1} parent=15 // pred_check
          %p134 = pneg %p53
        $region18: #{tpu_custom_call.1} parent=15 // pred_check_branch
          %136 = sbr.rel (%p134) target = $region20
        $region19: #{tpu_custom_call.1} parent=15 // pred_region
          %s137 = sand.u32 %s43, 1
          %s138 = scalar_lea.sflag [#allocation3], %s137
          %s139 = sand.u32 %s43, 1
          %s140 = smul.addr %s139, 8
          %s141 = scalar_lea.vmem [#allocation2], %s140
          %s142 = smul.u32 %s24, 4
          %s143 = sadd.s32 %s142, %s25
          %145 = vsyncadd %s138, 0
          %s146 = smul.addr %s143, 8
          %s147 = scalar_lea.hbm %s0, %s146
          %s149 = sshll.u32 %s147, 4
          %s150 = int_to_ptr.hbm [resolvable:$true] %s149
          %s151 = sshll.u32 %s141, 4
          %s152 = int_to_ptr.vmem [resolvable:$true] %s151
          %154 = dma.hbm_to_vmem [thread:$0]  %s150, 128, %s152, %s138
        $region20: #{tpu_custom_call.1} parent=15 // pred_fallthru
          _
        // Predicated region
        $region21: #{tpu_custom_call.1} parent=15 // pred_check
          %p155 = pneg %p83
        $region22: #{tpu_custom_call.1} parent=15 // pred_check_branch
          %157 = sbr.rel (%p155) target = $region24
        $region23: #{tpu_custom_call.1} parent=15 // pred_region
          %s158 = sand.u32 %s73, 1
          %s159 = scalar_lea.sflag [#allocation6], %s158
          %s160 = sand.u32 %s73, 1
          %s161 = smul.addr %s160, 8
          %s162 = scalar_lea.vmem [#allocation5], %s161
          %s163 = smul.u32 %s24, 4
          %s164 = sadd.s32 %s163, %s25
          %166 = vsyncadd %s159, 0
          %s167 = smul.addr %s164, 8
          %s168 = scalar_lea.hbm %s1, %s167
          %s170 = sshll.u32 %s168, 4
          %s171 = int_to_ptr.hbm [resolvable:$true] %s170
          %s172 = sshll.u32 %s162, 4
          %s173 = int_to_ptr.vmem [resolvable:$true] %s172
          %175 = dma.hbm_to_vmem [thread:$0]  %s171, 128, %s173, %s159
        $region24: #{tpu_custom_call.1} parent=15 // pred_fallthru
          _
      $region16: #{tpu_custom_call.1} parent=5 // pred_fallthru
        _
      %p176 = scmp.le.s32.totalorder 1, %s17
      %p177 = scmp.lt.s32.totalorder %s17, 9
      %p178 = pnand %p176, %p177
      %p179 = pneg %p178
      // Predicated region
      $region25: #{tpu_custom_call.1} parent=5 // pred_check
        _
      $region26: #{tpu_custom_call.1} parent=5 // pred_check_branch
        %181 = sbr.rel (%p178) target = $region28
      $region27: #{tpu_custom_call.1} parent=5 // pred_region
        %s182 = ssub.s32 %s17, 1
        %s183 = sand.u32 %s46, 1
        %s184 = scalar_lea.sflag [#allocation3], %s183
        %s185 = sand.u32 %s46, 1
        %s186 = smul.addr %s185, 8
        %s187 = scalar_lea.vmem [#allocation2], %s186
        // Predicated region
        $region29: #{tpu_custom_call.1} parent=27 // pred_check
          %p188 = pneg %p59
        $region30: #{tpu_custom_call.1} parent=27 // pred_check_branch
          %190 = sbr.rel (%p188) target = $region32
        $region31: #{tpu_custom_call.1} parent=27 // pred_region
          %192 = dma.done %s184, 128
        $region32: #{tpu_custom_call.1} parent=27 // pred_fallthru
          _
        %s193 = sand.u32 %s76, 1
        %s194 = scalar_lea.sflag [#allocation6], %s193
        %s195 = sand.u32 %s76, 1
        %s196 = smul.addr %s195, 8
        %s197 = scalar_lea.vmem [#allocation5], %s196
        // Predicated region
        $region33: #{tpu_custom_call.1} parent=27 // pred_check
          %p198 = pneg %p89
        $region34: #{tpu_custom_call.1} parent=27 // pred_check_branch
          %200 = sbr.rel (%p198) target = $region36
        $region35: #{tpu_custom_call.1} parent=27 // pred_region
          %202 = dma.done %s194, 128
        $region36: #{tpu_custom_call.1} parent=27 // pred_fallthru
          _
        %s203 = sand.u32 %s46, 1
        %s204 = scalar_lea.sflag [#allocation3], %s203
        %s205 = sand.u32 %s46, 1
        %s206 = smul.addr %s205, 8
        %s207 = scalar_lea.vmem [#allocation2], %s206
        %p208 = pneg %p59
        %p209 = pneg %p56
        %s210 = sand.u32 %s76, 1
        %s211 = scalar_lea.sflag [#allocation6], %s210
        %s212 = sand.u32 %s76, 1
        %s213 = smul.addr %s212, 8
        %s214 = scalar_lea.vmem [#allocation5], %s213
        %p215 = pneg %p89
        %p216 = pneg %p86
        %p217 = pneg %p115
        %p218 = pneg %p112
        %s219 = sand.u32 %s102, 1
        %s220 = scalar_lea.sflag [#allocation4], %s219
        %s221 = sand.u32 %s102, 1
        %s222 = smul.addr %s221, 32
        %s223 = scalar_lea.vmem [#allocation7], %s222
        %s224 = smul.u32 %s26, 4
        %s225 = sadd.s32 %s224, %s27
        %s226 = smul.u32 %s26, 4
        %s227 = sadd.s32 %s226, %s27
        %p228 = scmp.eq.s32.totalorder %s27, 0
        // Predicated region
        $region37: #{tpu_custom_call.1} parent=27 // pred_check
          %p229 = pneg %p228
        $region38: #{tpu_custom_call.1} parent=27 // pred_check_branch
          %231 = sbr.rel (%p229) target = $region40
        $region39: #{tpu_custom_call.1} parent=27 // pred_region
          %232 = vst [vmem:[%s223] sm:$0xff] 0.0
          %233 = vst [vmem:[%s223 + $0x8] sm:$0xff] 0.0
          %234 = vst [vmem:[%s223 + $0x10] sm:$0xff] 0.0
          %235 = vst [vmem:[%s223 + $0x18] sm:$0xff] 0.0
        $region40: #{tpu_custom_call.1} parent=27 // pred_fallthru
          _
        %v236 = vld [vmem:[%s187] sm:$0xff]
        %v237 = vld [vmem:[%s197] sm:$0xff]
        %v238 = vld [vmem:[%s223] sm:$0xff]
        %v239 = vadd.f32 %v236, 0.0
        %v240 = vadd.f32 %v238, %v239
        %241 = vst [vmem:[%s223] sm:$0xff] %v240
        %v242 = vld [vmem:[%s223 + $0x8] sm:$0xff]
        %v243 = vmul.f32 %v236, %v236
        %v244 = vadd.f32 %v243, 0.0
        %v245 = vadd.f32 %v242, %v244
        %246 = vst [vmem:[%s223 + $0x8] sm:$0xff] %v245
        %v247 = vld [vmem:[%s223 + $0x10] sm:$0xff]
        %v248 = vadd.f32 %v237, 0.0
        %v249 = vadd.f32 %v247, %v248
        %250 = vst [vmem:[%s223 + $0x10] sm:$0xff] %v249
        %v251 = vld [vmem:[%s223 + $0x18] sm:$0xff]
        %v252 = vmul.f32 %v237, %v237
        %v253 = vadd.f32 %v252, 0.0
        %v254 = vadd.f32 %v251, %v253
        %255 = vst [vmem:[%s223 + $0x18] sm:$0xff] %v254
        %s256 = sand.u32 %s102, 1
        %s257 = scalar_lea.sflag [#allocation4], %s256
        %s258 = sand.u32 %s102, 1
        %s259 = smul.addr %s258, 32
        %s260 = scalar_lea.vmem [#allocation7], %s259
        // Predicated region
        $region41: #{tpu_custom_call.1} parent=27 // pred_check
          %p261 = pneg %p112
        $region42: #{tpu_custom_call.1} parent=27 // pred_check_branch
          %263 = sbr.rel (%p261) target = $region44
        $region43: #{tpu_custom_call.1} parent=27 // pred_region
          %265 = vsyncadd %s257, 0
          %s266 = smul.addr %s26, 4
          %s267 = smul.addr %s266, 8
          %s268 = scalar_lea.hbm %s2, %s267
          %s269 = sshll.u32 %s260, 4
          %s270 = int_to_ptr.vmem [resolvable:$true] %s269
          %s271 = sshll.u32 %s268, 4
          %s272 = int_to_ptr.hbm [resolvable:$true] %s271
          %277 = dma.vmem_to_hbm [thread:$0]  %s270, 512, %s272, %s257, 128, 128, 8
        $region44: #{tpu_custom_call.1} parent=27 // pred_fallthru
          _
      $region28: #{tpu_custom_call.1} parent=5 // pred_fallthru
        _
      %p278 = scmp.le.s32.totalorder 2, %s17
      // Predicated region
      $region45: #{tpu_custom_call.1} parent=5 // pred_check
        %p279 = pneg %p278
      $region46: #{tpu_custom_call.1} parent=5 // pred_check_branch
        %281 = sbr.rel (%p279) target = $region48
      $region47: #{tpu_custom_call.1} parent=5 // pred_region
        %s282 = ssub.s32 %s17, 2
        // Predicated region
        $region49: #{tpu_custom_call.1} parent=47 // pred_check
          %p283 = pneg %p118
        $region50: #{tpu_custom_call.1} parent=47 // pred_check_branch
          %285 = sbr.rel (%p283) target = $region52
        $region51: #{tpu_custom_call.1} parent=47 // pred_region
          %s286 = sand.u32 %s103, 1
          %s287 = scalar_lea.sflag [#allocation4], %s286
          %s288 = sand.u32 %s103, 1
          %s289 = smul.addr %s288, 32
          %s290 = scalar_lea.vmem [#allocation7], %s289
          %292 = dma.done %s287, 512
        $region52: #{tpu_custom_call.1} parent=47 // pred_fallthru
          _
      $region48: #{tpu_custom_call.1} parent=5 // pred_fallthru
        _
    $region6: #{tpu_custom_call.1} parent=1 // loop_footer
      %s21 = sadd.s32 1, %s17
    $region7: #{tpu_custom_call.1} parent=1 // loop_footer_branch
      %16 = sbr.rel target = $region3
    $region8: #{tpu_custom_call.1} parent=1 // loop_exit
      _
    %293 = vsyncpa [#allocation3], 1
    %s294 = scalar_lea.sflag [#allocation3], 1
    %295 = vsyncpa %s294, 1
    %296 = vsyncpa [#allocation6], 1
    %s297 = scalar_lea.sflag [#allocation6], 1
    %298 = vsyncpa %s297, 1
    %299 = vsyncpa [#allocation4], 1
    %s300 = scalar_lea.sflag [#allocation4], 1
    %301 = vsyncpa %s300, 1

</llo_original>
